<compile_context>
chip_gen: v7x
topology: tpu7x:2x2x1
jax: 0.10.0
libtpu: 0.0.40
codegen_flags: <defaults>
</compile_context>

<pallas_src>
import functools

import jax
import jax.numpy as jnp
import numpy as np
from jax.experimental import pallas as pl
from jax.experimental.pallas import tpu as pltpu


# ----------------------------------------------------------------------------------
# Kernel A: SpectralConv mode mixing (complex, per kept mode m):
#   out[b, o, m] = sum_i x[b, i, m] * w[i, o, m]
# x real/imag blocks: (B, Ci, TM);  w real/imag blocks: (Ci, Co, TM);
# out real/imag blocks: (B, Co, TM).  M (lanes) is tiled by the grid.
# ----------------------------------------------------------------------------------
def spectral_mix_kernel(xr_ref, xi_ref, wr_ref, wi_ref, or_ref, oi_ref):
    xr = xr_ref[...][:, :, None, :]      # (B, Ci, 1, TM)
    xi = xi_ref[...][:, :, None, :]
    wr = wr_ref[...][None, :, :, :]      # (1, Ci, Co, TM)
    wi = wi_ref[...][None, :, :, :]
    # Gauss 3-multiply complex product, contracted over Ci (axis 1):
    #   real = k1 - k3,  imag = k1 + k2
    k1 = jnp.sum(wr * (xr + xi), axis=1)            # (B, Co, TM)
    k2 = jnp.sum(xr * (wi - wr), axis=1)
    k3 = jnp.sum(xi * (wr + wi), axis=1)
    or_ref[...] = k1 - k3
    oi_ref[...] = k1 + k2


# ----------------------------------------------------------------------------------
# Kernel B: per-batch fused real-space block:
#   out = W_fused @ taps9(x)  +  x_fno  +  bias
# where W_fused pre-folds  inv_gw * W_diff_taps  +  (skip - inv_gw * sum_taps W_diff)
# into the centre tap, so one matmul realizes skip + finite-difference conv.
# ----------------------------------------------------------------------------------
def local_block_kernel(x_ref, xfno_ref, w_ref, bias_ref, out_ref, *, width):
    # x_ref:    (Ci, HW)    input image, channels-first, spatial flattened (W fastest)
    # xfno_ref: (Co, HW)    irfft of spectrally mixed modes
    # w_ref:    (Co, 9*Ci)  fused tap weights, tap-major (t = 3*k + l)
    # bias_ref: (Co, 1)     SpectralConv bias
    # out_ref:  (Co, HW)
    x = x_ref[...]                                      # (Ci, HW) f32
    ci, hw = x.shape
    w = width

    # column index inside each image row (for the W-wrap fix-up)
    col = jax.lax.broadcasted_iota(jnp.int32, (ci, hw), 1) % w

    # circular W-shifts on the flattened axis, fixing the row-boundary wrap
    y_left = jnp.where(col == 0,
                       pltpu.roll(x, hw - w + 1, 1),
                       pltpu.roll(x, 1, 1))             # x[h, (w-1) mod W]   (l = 0)
    y_right = jnp.where(col == w - 1,
                        pltpu.roll(x, w - 1, 1),
                        pltpu.roll(x, hw - 1, 1))       # x[h, (w+1) mod W]   (l = 2)
    ycat = jnp.concatenate([y_left, x, y_right], axis=0)        # (3*Ci, HW), l-major

    # circular H-shifts: exact on the flattened axis (roll by +-W)
    xbig = jnp.concatenate([pltpu.roll(ycat, w, 1),             # k = 0  (h - 1)
                            ycat,                               # k = 1
                            pltpu.roll(ycat, hw - w, 1)],       # k = 2  (h + 1)
                           axis=0)                              # (9*Ci, HW), t = 3k+l

    conv = jnp.dot(w_ref[...].astype(jnp.bfloat16),
                   xbig.astype(jnp.bfloat16),
                   preferred_element_type=jnp.float32)          # (Co, HW)

    out_ref[...] = conv + xfno_ref[...] + bias_ref[...]


# ----------------------------------------------------------------------------------
# Wrapper: full LocalFNOBlocks.forward (postactivation, index=0, output_shape=None)
# ----------------------------------------------------------------------------------
def local_fno_block_forward(x, params, *, n_modes):
    B, Ci, H, W = x.shape
    wsp_r = params["spectral_w_real"]          # (Ci, Co, m1, kw)
    wsp_i = params["spectral_w_imag"]
    bias_spec = params["spectral_bias"]        # (Co,)
    w_skip = params["skip_w"]                  # (Co, Ci)
    w_diff = params["diff_w"]                  # (Co, Ci, 3, 3)
    Co = w_skip.shape[0]

    m1 = n_modes[0]
    kw = n_modes[1] // 2 + 1                   # SpectralConv keeps n_modes[-1]//2+1 rfft modes
    assert H % 2 == 0 and m1 % 2 == 0 and m1 <= H and kw <= W // 2 + 1
    mh = m1 // 2
    M = m1 * kw
    HW = H * W
    Wf = W // 2 + 1

    # --- SpectralConv forward FFT; keep the low/high frequency corner rows directly
    # (equivalent to the module's fftshift + centered slice for even H) --------------
    xf = jnp.fft.rfft2(x, norm="forward")                                  # (B,Ci,H,Wf)
    x_kept = jnp.concatenate([xf[:, :, :mh, :kw], xf[:, :, H - mh:, :kw]], axis=2)
    xr = jnp.real(x_kept).astype(jnp.float32).reshape(B, Ci, M)
    xi = jnp.imag(x_kept).astype(jnp.float32).reshape(B, Ci, M)

    # reorder the (small) weight along the mode axis instead of fftshifting the data
    wr = jnp.concatenate([wsp_r[:, :, mh:, :], wsp_r[:, :, :mh, :]], axis=2).reshape(Ci, Co, M)
    wi = jnp.concatenate([wsp_i[:, :, mh:, :], wsp_i[:, :, :mh, :]], axis=2).reshape(Ci, Co, M)

    # pad the mode axis to a multiple of 128 lanes and tile it with the grid
    TM = 128
    M_pad = ((M + TM - 1) // TM) * TM
    pad = M_pad - M
    xr_p = jnp.pad(xr, ((0, 0), (0, 0), (0, pad)))
    xi_p = jnp.pad(xi, ((0, 0), (0, 0), (0, pad)))
    wr_p = jnp.pad(wr, ((0, 0), (0, 0), (0, pad)))
    wi_p = jnp.pad(wi, ((0, 0), (0, 0), (0, pad)))

    out_r, out_i = pl.pallas_call(
        spectral_mix_kernel,
        out_shape=(jax.ShapeDtypeStruct((B, Co, M_pad), jnp.float32),
                   jax.ShapeDtypeStruct((B, Co, M_pad), jnp.float32)),
        grid=(M_pad // TM,),
        in_specs=[
            pl.BlockSpec((B, Ci, TM), lambda m: (0, 0, m)),
            pl.BlockSpec((B, Ci, TM), lambda m: (0, 0, m)),
            pl.BlockSpec((Ci, Co, TM), lambda m: (0, 0, m)),
            pl.BlockSpec((Ci, Co, TM), lambda m: (0, 0, m)),
        ],
        out_specs=(pl.BlockSpec((B, Co, TM), lambda m: (0, 0, m)),
                   pl.BlockSpec((B, Co, TM), lambda m: (0, 0, m))),
        compiler_params=pltpu.CompilerParams(dimension_semantics=("parallel",)),
    )(xr_p, xi_p, wr_p, wi_p)

    # --- rebuild the full (corner-laid-out) spectrum with concatenation, no scatter --
    out_kept = (out_r[:, :, :M] + 1j * out_i[:, :, :M]).reshape(B, Co, m1, kw)
    spec = jnp.concatenate(
        [out_kept[:, :, :mh, :],
         jnp.zeros((B, Co, H - m1, kw), jnp.complex64),
         out_kept[:, :, mh:, :]], axis=2)                                   # (B,Co,H,kw)
    out_fft = jnp.concatenate(
        [spec, jnp.zeros((B, Co, H, Wf - kw), jnp.complex64)], axis=3)      # (B,Co,H,Wf)
    x_fno = jnp.fft.irfft2(out_fft, s=(H, W), norm="forward")               # (B,Co,H,W)
    x_fno_flat = x_fno.reshape(B, Co, HW)                                   # free reshape

    # --- fold skip + finite-difference ('subtract_middle') weights into ONE matmul ---
    default_grid_res = W                       # forward() infers it from x on first call
    grid_width = 1.0 / (W / default_grid_res)  # grid_width_scaling_factor (== 1.0 here)
    inv_gw = float(1.0 / grid_width)

    wd_t9 = jnp.transpose(w_diff, (0, 2, 3, 1)).reshape(Co, 9, Ci)   # [o, t=3k+l, i]
    w_big = inv_gw * wd_t9
    w_big = w_big.at[:, 4, :].add(w_skip - inv_gw * jnp.sum(wd_t9, axis=1))
    w_fused = w_big.reshape(Co, 9 * Ci)
    bias2d = bias_spec.reshape(Co, 1)

    x_flat = x.reshape(B, Ci, HW)              # free reshape, input read once

    out_flat = pl.pallas_call(
        functools.partial(local_block_kernel, width=W),
        out_shape=jax.ShapeDtypeStruct((B, Co, HW), jnp.float32),
        grid=(B,),
        in_specs=[
            pl.BlockSpec((None, Ci, HW), lambda b: (b, 0, 0)),
            pl.BlockSpec((None, Co, HW), lambda b: (b, 0, 0)),
            pl.BlockSpec((Co, 9 * Ci), lambda b: (0, 0)),
            pl.BlockSpec((Co, 1), lambda b: (0, 0)),
        ],
        out_specs=pl.BlockSpec((None, Co, HW), lambda b: (b, 0, 0)),
        compiler_params=pltpu.CompilerParams(dimension_semantics=("parallel",)),
    )(x_flat, x_fno_flat, w_fused, bias2d)

    # n_layers == 1, no MLP / norm -> no trailing nonlinearity
    return out_flat.reshape(B, Co, H, W)


# ----------------------------------------------------------------------------------
# Pure-JAX reference (same math as the PyTorch module, no Pallas) - correctness check.
# ----------------------------------------------------------------------------------
def reference_forward(x, params, *, n_modes):
    B, Ci, H, W = x.shape
    w_c = params["spectral_w_real"] + 1j * params["spectral_w_imag"]
    bias_spec = params["spectral_bias"]
    w_skip = params["skip_w"]
    w_diff = params["diff_w"]
    Co = w_skip.shape[0]
    m1 = n_modes[0]
    kw = n_modes[1] // 2 + 1
    r0 = (H - m1) // 2

    xf = jnp.fft.fftshift(jnp.fft.rfft2(x, norm="forward"), axes=-2)
    out_modes = jnp.einsum("bixy,ioxy->boxy", xf[:, :, r0:r0 + m1, :kw], w_c,
                           precision=jax.lax.Precision.HIGHEST)
    out_fft = jnp.zeros((B, Co, H, W // 2 + 1), jnp.complex64)
    out_fft = out_fft.at[:, :, r0:r0 + m1, :kw].set(out_modes)
    out_fft = jnp.fft.fftshift(out_fft, axes=-2)
    x_fno = jnp.fft.irfft2(out_fft, s=(H, W), norm="forward")
    x_fno = x_fno + bias_spec[None, :, None, None]

    skip = jnp.einsum("oi,bihw->bohw", w_skip, x, precision=jax.lax.Precision.HIGHEST)

    conv = jnp.zeros((B, Co, H, W), jnp.float32)
    for k in range(3):
        for l in range(3):
            xs = jnp.roll(x, shift=(-(k - 1), -(l - 1)), axis=(2, 3))
            conv = conv + jnp.einsum("oi,bihw->bohw", w_diff[:, :, k, l], xs,
                                     precision=jax.lax.Precision.HIGHEST)
    conv_sum = jnp.einsum("oi,bihw->bohw", w_diff.sum(axis=(2, 3)), x,
                          precision=jax.lax.Precision.HIGHEST)
    default_grid_res = W
    grid_width = 1.0 / (W / default_grid_res)
    diff = (conv - conv_sum) / grid_width

    return x_fno + diff + skip


if __name__ == "__main__":
    B, Ci, Co, H, W = 2, 4, 4, 16, 16
    n_modes = (8, 8)
    kw_modes = n_modes[1] // 2 + 1

    key = jax.random.PRNGKey(0)
    kx, k1, k2, k3, k4, k5 = jax.random.split(key, 6)
    init_std = (2.0 / (Ci + Co)) ** 0.5
    params = {
        "spectral_w_real": init_std * jax.random.normal(
            k1, (Ci, Co, n_modes[0], kw_modes), jnp.float32),
        "spectral_w_imag": init_std * jax.random.normal(
            k2, (Ci, Co, n_modes[0], kw_modes), jnp.float32),
        "spectral_bias": init_std * jax.random.normal(k3, (Co,), jnp.float32),
        "skip_w": jax.random.normal(k4, (Co, Ci), jnp.float32) / np.sqrt(Ci),
        "diff_w": jax.random.normal(k5, (Co, Ci, 3, 3), jnp.float32) / np.sqrt(Ci * 9),
    }
    x = jax.random.normal(kx, (B, Ci, H, W), jnp.float32)

    fwd = jax.jit(functools.partial(local_fno_block_forward, n_modes=n_modes))
    out = jax.block_until_ready(fwd(x, params))
    assert out.shape == (B, Co, H, W)

    ref = reference_forward(x, params, n_modes=n_modes)
    np.testing.assert_allclose(np.asarray(out), np.asarray(ref), rtol=2e-2, atol=2e-2)
    print("KERNEL_OK")
</pallas_src>

<mosaic_0001>
module attributes {stable_mosaic.version = 11 : i64} {
  func.func @spectral_mix_kernel(%arg0: i32, %arg1: memref<2x4x128xf32, #tpu.memory_space<vmem>>, %arg2: memref<2x4x128xf32, #tpu.memory_space<vmem>>, %arg3: memref<4x4x128xf32, #tpu.memory_space<vmem>>, %arg4: memref<4x4x128xf32, #tpu.memory_space<vmem>>, %arg5: memref<2x4x128xf32, #tpu.memory_space<vmem>>, %arg6: memref<2x4x128xf32, #tpu.memory_space<vmem>>) attributes {dimension_semantics = [#tpu.dimension_semantics<parallel>], iteration_bounds = array<i64: 1>, scalar_prefetch = 0 : i64, scratch_operands = 0 : i64, tpu.core_type = #tpu.core_type<tc>, window_params = [{transform_indices = @transform_0, window_bounds = array<i64: 2, 4, 128>}, {transform_indices = @transform_1, window_bounds = array<i64: 2, 4, 128>}, {transform_indices = @transform_2, window_bounds = array<i64: 4, 4, 128>}, {transform_indices = @transform_3, window_bounds = array<i64: 4, 4, 128>}, {transform_indices = @transform_4, window_bounds = array<i64: 2, 4, 128>}, {transform_indices = @transform_5, window_bounds = array<i64: 2, 4, 128>}]} {
    %c0 = arith.constant 0 : index
    %c0_0 = arith.constant 0 : index
    %c0_1 = arith.constant 0 : index
    %0 = vector.load %arg1[%c0, %c0_0, %c0_1] : memref<2x4x128xf32, #tpu.memory_space<vmem>>, vector<2x4x128xf32>
    %1 = vector.shape_cast %0 : vector<2x4x128xf32> to vector<2x4x1x128xf32>
    %c0_2 = arith.constant 0 : index
    %c0_3 = arith.constant 0 : index
    %c0_4 = arith.constant 0 : index
    %2 = vector.load %arg2[%c0_2, %c0_3, %c0_4] : memref<2x4x128xf32, #tpu.memory_space<vmem>>, vector<2x4x128xf32>
    %3 = vector.shape_cast %2 : vector<2x4x128xf32> to vector<2x4x1x128xf32>
    %c0_5 = arith.constant 0 : index
    %c0_6 = arith.constant 0 : index
    %c0_7 = arith.constant 0 : index
    %4 = vector.load %arg3[%c0_5, %c0_6, %c0_7] : memref<4x4x128xf32, #tpu.memory_space<vmem>>, vector<4x4x128xf32>
    %5 = vector.shape_cast %4 : vector<4x4x128xf32> to vector<1x4x4x128xf32>
    %c0_8 = arith.constant 0 : index
    %c0_9 = arith.constant 0 : index
    %c0_10 = arith.constant 0 : index
    %6 = vector.load %arg4[%c0_8, %c0_9, %c0_10] : memref<4x4x128xf32, #tpu.memory_space<vmem>>, vector<4x4x128xf32>
    %7 = vector.shape_cast %6 : vector<4x4x128xf32> to vector<1x4x4x128xf32>
    %8 = arith.addf %1, %3 : vector<2x4x1x128xf32>
    %9 = vector.broadcast %5 : vector<1x4x4x128xf32> to vector<2x4x4x128xf32>
    %10 = vector.broadcast %8 : vector<2x4x1x128xf32> to vector<2x4x4x128xf32>
    %11 = arith.mulf %9, %10 : vector<2x4x4x128xf32>
    %cst = arith.constant dense<0.000000e+00> : vector<2x4x128xf32>
    %12 = vector.multi_reduction <add>, %11, %cst [1] : vector<2x4x4x128xf32> to vector<2x4x128xf32>
    %13 = arith.subf %7, %5 : vector<1x4x4x128xf32>
    %14 = vector.broadcast %1 : vector<2x4x1x128xf32> to vector<2x4x4x128xf32>
    %15 = vector.broadcast %13 : vector<1x4x4x128xf32> to vector<2x4x4x128xf32>
    %16 = arith.mulf %14, %15 : vector<2x4x4x128xf32>
    %cst_11 = arith.constant dense<0.000000e+00> : vector<2x4x128xf32>
    %17 = vector.multi_reduction <add>, %16, %cst_11 [1] : vector<2x4x4x128xf32> to vector<2x4x128xf32>
    %18 = arith.addf %5, %7 : vector<1x4x4x128xf32>
    %19 = vector.broadcast %3 : vector<2x4x1x128xf32> to vector<2x4x4x128xf32>
    %20 = vector.broadcast %18 : vector<1x4x4x128xf32> to vector<2x4x4x128xf32>
    %21 = arith.mulf %19, %20 : vector<2x4x4x128xf32>
    %cst_12 = arith.constant dense<0.000000e+00> : vector<2x4x128xf32>
    %22 = vector.multi_reduction <add>, %21, %cst_12 [1] : vector<2x4x4x128xf32> to vector<2x4x128xf32>
    %23 = arith.subf %12, %22 : vector<2x4x128xf32>
    %c0_13 = arith.constant 0 : index
    %c0_14 = arith.constant 0 : index
    %c0_15 = arith.constant 0 : index
    %24 = vector.load %arg5[%c0_13, %c0_14, %c0_15] : memref<2x4x128xf32, #tpu.memory_space<vmem>>, vector<2x4x128xf32>
    tpu.vector_store %arg5[%c0_13, %c0_14, %c0_15], %23 {strides = array<i32>} : memref<2x4x128xf32, #tpu.memory_space<vmem>>, vector<2x4x128xf32>,
    %25 = arith.addf %12, %17 : vector<2x4x128xf32>
    %c0_16 = arith.constant 0 : index
    %c0_17 = arith.constant 0 : index
    %c0_18 = arith.constant 0 : index
    %26 = vector.load %arg6[%c0_16, %c0_17, %c0_18] : memref<2x4x128xf32, #tpu.memory_space<vmem>>, vector<2x4x128xf32>
    tpu.vector_store %arg6[%c0_16, %c0_17, %c0_18], %25 {strides = array<i32>} : memref<2x4x128xf32, #tpu.memory_space<vmem>>, vector<2x4x128xf32>,
    return
  }
  func.func @transform_0(%arg0: i32) -> (i32, i32, i32) {
    %c0_i32 = arith.constant 0 : i32
    %c0_i32_0 = arith.constant 0 : i32
    %c0_i32_1 = arith.constant 0 : i32
    return %c0_i32, %c0_i32_0, %arg0 : i32, i32, i32
  }
  func.func @transform_1(%arg0: i32) -> (i32, i32, i32) {
    %c0_i32 = arith.constant 0 : i32
    %c0_i32_0 = arith.constant 0 : i32
    %c0_i32_1 = arith.constant 0 : i32
    return %c0_i32, %c0_i32_0, %arg0 : i32, i32, i32
  }
  func.func @transform_2(%arg0: i32) -> (i32, i32, i32) {
    %c0_i32 = arith.constant 0 : i32
    %c0_i32_0 = arith.constant 0 : i32
    %c0_i32_1 = arith.constant 0 : i32
    return %c0_i32, %c0_i32_0, %arg0 : i32, i32, i32
  }
  func.func @transform_3(%arg0: i32) -> (i32, i32, i32) {
    %c0_i32 = arith.constant 0 : i32
    %c0_i32_0 = arith.constant 0 : i32
    %c0_i32_1 = arith.constant 0 : i32
    return %c0_i32, %c0_i32_0, %arg0 : i32, i32, i32
  }
  func.func @transform_4(%arg0: i32) -> (i32, i32, i32) {
    %c0_i32 = arith.constant 0 : i32
    %c0_i32_0 = arith.constant 0 : i32
    %c0_i32_1 = arith.constant 0 : i32
    return %c0_i32, %c0_i32_0, %arg0 : i32, i32, i32
  }
  func.func @transform_5(%arg0: i32) -> (i32, i32, i32) {
    %c0_i32 = arith.constant 0 : i32
    %c0_i32_0 = arith.constant 0 : i32
    %c0_i32_1 = arith.constant 0 : i32
    return %c0_i32, %c0_i32_0, %arg0 : i32, i32, i32
  }
}

module attributes {stable_mosaic.version = 11 : i64} {
  func.func @local_block_kernel(%arg0: i32, %arg1: memref<1x4x256xf32, #tpu.memory_space<vmem>>, %arg2: memref<1x4x256xf32, #tpu.memory_space<vmem>>, %arg3: memref<4x36xf32, #tpu.memory_space<vmem>>, %arg4: memref<4x1xf32, #tpu.memory_space<vmem>>, %arg5: memref<1x4x256xf32, #tpu.memory_space<vmem>>) attributes {dimension_semantics = [#tpu.dimension_semantics<parallel>], iteration_bounds = array<i64: 2>, scalar_prefetch = 0 : i64, scratch_operands = 0 : i64, tpu.core_type = #tpu.core_type<tc>, window_params = [{transform_indices = @transform_0, window_bounds = array<i64: 1, 4, 256>}, {transform_indices = @transform_1, window_bounds = array<i64: 1, 4, 256>}, {pipeline_mode = #tpu.pipeline_mode<synchronous>, transform_indices = @transform_2, window_bounds = array<i64: 4, 36>}, {pipeline_mode = #tpu.pipeline_mode<synchronous>, transform_indices = @transform_3, window_bounds = array<i64: 4, 1>}, {transform_indices = @transform_4, window_bounds = array<i64: 1, 4, 256>}]} {
    %c0 = arith.constant 0 : index
    %c0_0 = arith.constant 0 : index
    %c0_1 = arith.constant 0 : index
    %0 = vector.load %arg1[%c0, %c0_0, %c0_1] : memref<1x4x256xf32, #tpu.memory_space<vmem>>, vector<1x4x256xf32>
    %1 = vector.shape_cast %0 : vector<1x4x256xf32> to vector<4x256xf32>
    %2 = tpu.iota {dimensions = array<i32: 1>} : vector<4x256xi32>
    %c16_i32 = arith.constant 16 : i32
    %c0_i32 = arith.constant 0 : i32
    %3 = arith.cmpi eq, %c16_i32, %c0_i32 : i32
    %c1_i32 = arith.constant 1 : i32
    %4 = arith.select %3, %c1_i32, %c16_i32 : i32
    %5 = vector.broadcast %4 : i32 to vector<4x256xi32>
    %6 = arith.remsi %2, %5 : vector<4x256xi32>
    %c0_i32_2 = arith.constant 0 : i32
    %7 = vector.broadcast %c0_i32_2 : i32 to vector<4x256xi32>
    %8 = arith.cmpi ne, %6, %7 : vector<4x256xi32>
    %c0_i32_3 = arith.constant 0 : i32
    %9 = vector.broadcast %c0_i32_3 : i32 to vector<4x256xi32>
    %10 = arith.cmpi slt, %6, %9 : vector<4x256xi32>
    %c0_i32_4 = arith.constant 0 : i32
    %11 = arith.cmpi slt, %4, %c0_i32_4 : i32
    %12 = vector.broadcast %11 : i1 to vector<4x256xi1>
    %13 = vector.broadcast %12 : vector<4x256xi1> to vector<4x256xi1>
    %14 = arith.xori %10, %13 : vector<4x256xi1>
    %15 = arith.andi %14, %8 : vector<4x256xi1>
    %16 = vector.broadcast %4 : i32 to vector<4x256xi32>
    %17 = arith.addi %6, %16 : vector<4x256xi32>
    %18 = arith.select %15, %17, %6 : vector<4x256xi1>, vector<4x256xi32>
    %c0_i32_5 = arith.constant 0 : i32
    %19 = vector.broadcast %c0_i32_5 : i32 to vector<4x256xi32>
    %20 = arith.cmpi eq, %18, %19 : vector<4x256xi32>
    %c241_i32 = arith.constant 241 : i32
    %21 = tpu.dynamic_rotate %1 by %c241_i32 dim 1 : vector<4x256xf32>, i32 -> vector<4x256xf32>
    %c1_i32_6 = arith.constant 1 : i32
    %22 = tpu.dynamic_rotate %1 by %c1_i32_6 dim 1 : vector<4x256xf32>, i32 -> vector<4x256xf32>
    %23 = arith.select %20, %21, %22 : vector<4x256xi1>, vector<4x256xf32>
    %c15_i32 = arith.constant 15 : i32
    %24 = vector.broadcast %c15_i32 : i32 to vector<4x256xi32>
    %25 = arith.cmpi eq, %18, %24 : vector<4x256xi32>
    %c15_i32_7 = arith.constant 15 : i32
    %26 = tpu.dynamic_rotate %1 by %c15_i32_7 dim 1 : vector<4x256xf32>, i32 -> vector<4x256xf32>
    %c255_i32 = arith.constant 255 : i32
    %27 = tpu.dynamic_rotate %1 by %c255_i32 dim 1 : vector<4x256xf32>, i32 -> vector<4x256xf32>
    %28 = arith.select %25, %26, %27 : vector<4x256xi1>, vector<4x256xf32>
    %29 = tpu.concatenate %23, %1, %28 in 0 : vector<4x256xf32>, vector<4x256xf32>, vector<4x256xf32> -> vector<12x256xf32>
    %c16_i32_8 = arith.constant 16 : i32
    %30 = tpu.dynamic_rotate %29 by %c16_i32_8 dim 1 : vector<12x256xf32>, i32 -> vector<12x256xf32>
    %c240_i32 = arith.constant 240 : i32
    %31 = tpu.dynamic_rotate %29 by %c240_i32 dim 1 : vector<12x256xf32>, i32 -> vector<12x256xf32>
    %32 = tpu.concatenate %30, %29, %31 in 0 : vector<12x256xf32>, vector<12x256xf32>, vector<12x256xf32> -> vector<36x256xf32>
    %c0_9 = arith.constant 0 : index
    %c0_10 = arith.constant 0 : index
    %33 = vector.load %arg3[%c0_9, %c0_10] : memref<4x36xf32, #tpu.memory_space<vmem>>, vector<4x36xf32>
    %34 = arith.truncf %33 : vector<4x36xf32> to vector<4x36xbf16>
    %35 = arith.truncf %32 : vector<36x256xf32> to vector<36x256xbf16>
    %cst = arith.constant dense<0.000000e+00> : vector<4x256xf32>
    %36 = tpu.matmul %34, %35, %cst {dimension_numbers = #tpu.dot_dimension_numbers<[1], [0], [0], [1], [0, 0, 1, 1], [], []>} : vector<4x36xbf16>, vector<36x256xbf16>, vector<4x256xf32> -> vector<4x256xf32>
    %c0_11 = arith.constant 0 : index
    %c0_12 = arith.constant 0 : index
    %c0_13 = arith.constant 0 : index
    %37 = vector.load %arg2[%c0_11, %c0_12, %c0_13] : memref<1x4x256xf32, #tpu.memory_space<vmem>>, vector<1x4x256xf32>
    %38 = vector.shape_cast %37 : vector<1x4x256xf32> to vector<4x256xf32>
    %39 = arith.addf %36, %38 : vector<4x256xf32>
    %c0_14 = arith.constant 0 : index
    %c0_15 = arith.constant 0 : index
    %40 = vector.load %arg4[%c0_14, %c0_15] : memref<4x1xf32, #tpu.memory_space<vmem>>, vector<4x1xf32>
    %41 = vector.broadcast %40 : vector<4x1xf32> to vector<4x256xf32>
    %42 = arith.addf %39, %41 : vector<4x256xf32>
    %c0_16 = arith.constant 0 : index
    %c0_17 = arith.constant 0 : index
    %c0_18 = arith.constant 0 : index
    %43 = vector.load %arg5[%c0_16, %c0_17, %c0_18] : memref<1x4x256xf32, #tpu.memory_space<vmem>>, vector<1x4x256xf32>
    %44 = vector.shape_cast %43 : vector<1x4x256xf32> to vector<4x256xf32>
    %45 = vector.shape_cast %42 : vector<4x256xf32> to vector<1x4x256xf32>
    tpu.vector_store %arg5[%c0_16, %c0_17, %c0_18], %45 {strides = array<i32>} : memref<1x4x256xf32, #tpu.memory_space<vmem>>, vector<1x4x256xf32>,
    return
  }
  func.func @transform_0(%arg0: i32) -> (i32, i32, i32) {
    %c0_i32 = arith.constant 0 : i32
    %c0_i32_0 = arith.constant 0 : i32
    %c0_i32_1 = arith.constant 0 : i32
    return %arg0, %c0_i32, %c0_i32_0 : i32, i32, i32
  }
  func.func @transform_1(%arg0: i32) -> (i32, i32, i32) {
    %c0_i32 = arith.constant 0 : i32
    %c0_i32_0 = arith.constant 0 : i32
    %c0_i32_1 = arith.constant 0 : i32
    return %arg0, %c0_i32, %c0_i32_0 : i32, i32, i32
  }
  func.func @transform_2(%arg0: i32) -> (i32, i32) {
    %c0_i32 = arith.constant 0 : i32
    %c0_i32_0 = arith.constant 0 : i32
    %c0_i32_1 = arith.constant 0 : i32
    return %c0_i32, %c0_i32_0 : i32, i32
  }
  func.func @transform_3(%arg0: i32) -> (i32, i32) {
    %c0_i32 = arith.constant 0 : i32
    %c0_i32_0 = arith.constant 0 : i32
    %c0_i32_1 = arith.constant 0 : i32
    return %c0_i32, %c0_i32_0 : i32, i32
  }
  func.func @transform_4(%arg0: i32) -> (i32, i32, i32) {
    %c0_i32 = arith.constant 0 : i32
    %c0_i32_0 = arith.constant 0 : i32
    %c0_i32_1 = arith.constant 0 : i32
    return %arg0, %c0_i32, %c0_i32_0 : i32, i32, i32
  }
}

</mosaic_0001>

<llo_original>
// kernel: reverse.0
$region0: #{reverse.0}
  %s0 = inlined_call_operand.vmem [shape: f32[2,4,16,7], index: 0, kind: input, shape index: {}]
  %s1 = inlined_call_operand.vmem [shape: f32[2,4,16,7], index: 1, kind: output, shape index: {}]
  $region1: #{reverse.0} parent=0
    #allocation0 [shape = 'u8[65536]{0}', space=vmem, size = 0x10000, scoped, tag = 'operand span for operand 0']
    #allocation1 [shape = 'u8[32768]{0}', space=vmem, size = 0x8000, scoped, tag = 'operand span for operand 1']
    %s2 = scalar_lea.vmem [#allocation0], 8
    // Predicated region
    $region2: #{reverse.0} parent=1 // pred_check
      _
    $region3: #{reverse.0} parent=1 // pred_check_branch
      %4 = sbr.rel (0) target = $region5
    $region4: #{reverse.0} parent=1 // pred_region
      // Predicated region
      $region6: #{reverse.0} parent=4 // pred_check
        _
      $region7: #{reverse.0} parent=4 // pred_check_branch
        %6 = sbr.rel (0) target = $region9
      $region8: #{reverse.0} parent=4 // pred_region
        // Predicated region
        $region21: #{reverse.0} parent=8 // pred_check
          _
        $region22: #{reverse.0} parent=8 // pred_check_branch
          %35 = sbr.rel (0) target = $region24
        $region23: #{reverse.0} parent=8 // pred_region
          loop: start=0, step=1, limit=1
          $region25: #{reverse.0} parent=23 // loop_pre_header
            _
          $region26: #{reverse.0} parent=23 // loop_header
            %s37 = sphi 0, %s41
            %p38 = scmp.ge.s32.totalorder %s37, 1
            %s42 = sphi %s0, %s0
            %s43 = sphi %s2, %s2
          $region27: #{reverse.0} parent=23 // loop_header_branch
            %40 = sbr.rel (%p38) target = $region31
          $region28: #{reverse.0} parent=23 // loop_body
            %v44 = vld [vmem:[%s42] sm:$0xff]
            %45 = vst [vmem:[%s43] sm:$0xff] %v44
            %v46 = vld [vmem:[%s42 + $0x8] sm:$0xff]
            %47 = vst [vmem:[%s43 + $0x10] sm:$0xff] %v46
            %v48 = vld [vmem:[%s42 + $0x10] sm:$0xff]
            %49 = vst [vmem:[%s43 + $0x20] sm:$0xff] %v48
            %v50 = vld [vmem:[%s42 + $0x18] sm:$0xff]
            %51 = vst [vmem:[%s43 + $0x30] sm:$0xff] %v50
            %v52 = vld [vmem:[%s42 + $0x20] sm:$0xff]
            %53 = vst [vmem:[%s43 + $0x40] sm:$0xff] %v52
            %v54 = vld [vmem:[%s42 + $0x28] sm:$0xff]
            %55 = vst [vmem:[%s43 + $0x50] sm:$0xff] %v54
            %v56 = vld [vmem:[%s42 + $0x30] sm:$0xff]
            %57 = vst [vmem:[%s43 + $0x60] sm:$0xff] %v56
            %v58 = vld [vmem:[%s42 + $0x38] sm:$0xff]
            %59 = vst [vmem:[%s43 + $0x70] sm:$0xff] %v58
          $region29: #{reverse.0} parent=23 // loop_footer
            %s41 = sadd.s32 1, %s37
          $region30: #{reverse.0} parent=23 // loop_footer_branch
            %36 = sbr.rel target = $region26
          $region31: #{reverse.0} parent=23 // loop_exit
            _
        $region24: #{reverse.0} parent=8 // pred_fallthru
          _
        // Predicated region
        $region32: #{reverse.0} parent=8 // pred_check
          _
        $region33: #{reverse.0} parent=8 // pred_check_branch
          %61 = sbr.rel target = $region35
        $region34: #{reverse.0} parent=8 // pred_region
          _
        $region35: #{reverse.0} parent=8 // pred_fallthru
          _
      $region9: #{reverse.0} parent=4 // pred_fallthru
        _
      // Predicated region
      $region10: #{reverse.0} parent=4 // pred_check
        _
      $region11: #{reverse.0} parent=4 // pred_check_branch
        %8 = sbr.rel target = $region13
      $region12: #{reverse.0} parent=4 // pred_region
        loop: start=0, step=1, limit=1
        $region14: #{reverse.0} parent=12 // loop_pre_header
          _
        $region15: #{reverse.0} parent=12 // loop_header
          %s11 = sphi 0, %s15
          %p12 = scmp.ge.s32.totalorder %s11, 1
          %s16 = sphi %s0, %s0
          %s17 = sphi %s2, %s2
        $region16: #{reverse.0} parent=12 // loop_header_branch
          %14 = sbr.rel (%p12) target = $region20
        $region17: #{reverse.0} parent=12 // loop_body
          %v18 = vld [vmem:[%s16] sm:$0xff]
          %19 = vst [vmem:[%s17] sm:$0xff] %v18
          %v20 = vld [vmem:[%s16 + $0x8] sm:$0xff]
          %21 = vst [vmem:[%s17 + $0x10] sm:$0xff] %v20
          %v22 = vld [vmem:[%s16 + $0x10] sm:$0xff]
          %23 = vst [vmem:[%s17 + $0x20] sm:$0xff] %v22
          %v24 = vld [vmem:[%s16 + $0x18] sm:$0xff]
          %25 = vst [vmem:[%s17 + $0x30] sm:$0xff] %v24
          %v26 = vld [vmem:[%s16 + $0x20] sm:$0xff]
          %27 = vst [vmem:[%s17 + $0x40] sm:$0xff] %v26
          %v28 = vld [vmem:[%s16 + $0x28] sm:$0xff]
          %29 = vst [vmem:[%s17 + $0x50] sm:$0xff] %v28
          %v30 = vld [vmem:[%s16 + $0x30] sm:$0xff]
          %31 = vst [vmem:[%s17 + $0x60] sm:$0xff] %v30
          %v32 = vld [vmem:[%s16 + $0x38] sm:$0xff]
          %33 = vst [vmem:[%s17 + $0x70] sm:$0xff] %v32
        $region18: #{reverse.0} parent=12 // loop_footer
          %s15 = sadd.s32 1, %s11
        $region19: #{reverse.0} parent=12 // loop_footer_branch
          %10 = sbr.rel target = $region15
        $region20: #{reverse.0} parent=12 // loop_exit
          _
      $region13: #{reverse.0} parent=4 // pred_fallthru
        _
    $region5: #{reverse.0} parent=1 // pred_fallthru
      _
    %62 = vnop
    %s63 = scalar_lea.vmem [#allocation0], 7
    %v64 = vld [vmem:[%s63] ss:$-1 sm:$0xff]
    %v65 = vrot.slane %v64, 1
    %66 = vst [vmem:[#allocation1] sm:$0xff] %v65
    %s67 = scalar_lea.vmem [#allocation0], 8
    %s68 = scalar_lea.vmem %s67, 7 [#allocation0]
    %v69 = vld [vmem:[%s68] ss:$-1 sm:$0xff]
    %v70 = vrot.slane %v69, 1
    %v71 = vlaneseq
    %v72 = vshrl.u32 %v71, 7
    %vm73 = vcmp.lt.s32.totalorder %v72, 7
    %74 = vst.msk [vmem:[#allocation1] sm:$0xff] %vm73, %v70
    %s75 = scalar_lea.vmem [#allocation1], 8
    %s76 = scalar_lea.vmem [#allocation0], 16
    %s77 = scalar_lea.vmem %s76, 7 [#allocation0]
    %v78 = vld [vmem:[%s77] ss:$-1 sm:$0xff]
    %v79 = vrot.slane %v78, 1
    %80 = vst [vmem:[%s75] sm:$0xff] %v79
    %s81 = scalar_lea.vmem %s76, 8 [#allocation0]
    %s82 = scalar_lea.vmem %s81, 7 [#allocation0]
    %v83 = vld [vmem:[%s82] ss:$-1 sm:$0xff]
    %v84 = vrot.slane %v83, 1
    %v85 = vlaneseq
    %v86 = vshrl.u32 %v85, 7
    %vm87 = vcmp.lt.s32.totalorder %v86, 7
    %88 = vst.msk [vmem:[%s75] sm:$0xff] %vm87, %v84
    %s89 = scalar_lea.vmem [#allocation1], 16
    %s90 = scalar_lea.vmem [#allocation0], 32
    %s91 = scalar_lea.vmem %s90, 7 [#allocation0]
    %v92 = vld [vmem:[%s91] ss:$-1 sm:$0xff]
    %v93 = vrot.slane %v92, 1
    %94 = vst [vmem:[%s89] sm:$0xff] %v93
    %s95 = scalar_lea.vmem %s90, 8 [#allocation0]
    %s96 = scalar_lea.vmem %s95, 7 [#allocation0]
    %v97 = vld [vmem:[%s96] ss:$-1 sm:$0xff]
    %v98 = vrot.slane %v97, 1
    %v99 = vlaneseq
    %v100 = vshrl.u32 %v99, 7
    %vm101 = vcmp.lt.s32.totalorder %v100, 7
    %102 = vst.msk [vmem:[%s89] sm:$0xff] %vm101, %v98
    %s103 = scalar_lea.vmem [#allocation1], 24
    %s104 = scalar_lea.vmem [#allocation0], 48
    %s105 = scalar_lea.vmem %s104, 7 [#allocation0]
    %v106 = vld [vmem:[%s105] ss:$-1 sm:$0xff]
    %v107 = vrot.slane %v106, 1
    %108 = vst [vmem:[%s103] sm:$0xff] %v107
    %s109 = scalar_lea.vmem %s104, 8 [#allocation0]
    %s110 = scalar_lea.vmem %s109, 7 [#allocation0]
    %v111 = vld [vmem:[%s110] ss:$-1 sm:$0xff]
    %v112 = vrot.slane %v111, 1
    %v113 = vlaneseq
    %v114 = vshrl.u32 %v113, 7
    %vm115 = vcmp.lt.s32.totalorder %v114, 7
    %116 = vst.msk [vmem:[%s103] sm:$0xff] %vm115, %v112
    %s117 = scalar_lea.vmem [#allocation1], 32
    %s118 = scalar_lea.vmem [#allocation0], 64
    %s119 = scalar_lea.vmem %s118, 7 [#allocation0]
    %v120 = vld [vmem:[%s119] ss:$-1 sm:$0xff]
    %v121 = vrot.slane %v120, 1
    %122 = vst [vmem:[%s117] sm:$0xff] %v121
    %s123 = scalar_lea.vmem %s118, 8 [#allocation0]
    %s124 = scalar_lea.vmem %s123, 7 [#allocation0]
    %v125 = vld [vmem:[%s124] ss:$-1 sm:$0xff]
    %v126 = vrot.slane %v125, 1
    %v127 = vlaneseq
    %v128 = vshrl.u32 %v127, 7
    %vm129 = vcmp.lt.s32.totalorder %v128, 7
    %130 = vst.msk [vmem:[%s117] sm:$0xff] %vm129, %v126
    %s131 = scalar_lea.vmem [#allocation1], 40
    %s132 = scalar_lea.vmem [#allocation0], 80
    %s133 = scalar_lea.vmem %s132, 7 [#allocation0]
    %v134 = vld [vmem:[%s133] ss:$-1 sm:$0xff]
    %v135 = vrot.slane %v134, 1
    %136 = vst [vmem:[%s131] sm:$0xff] %v135
    %s137 = scalar_lea.vmem %s132, 8 [#allocation0]
    %s138 = scalar_lea.vmem %s137, 7 [#allocation0]
    %v139 = vld [vmem:[%s138] ss:$-1 sm:$0xff]
    %v140 = vrot.slane %v139, 1
    %v141 = vlaneseq
    %v142 = vshrl.u32 %v141, 7
    %vm143 = vcmp.lt.s32.totalorder %v142, 7
    %144 = vst.msk [vmem:[%s131] sm:$0xff] %vm143, %v140
    %s145 = scalar_lea.vmem [#allocation1], 48
    %s146 = scalar_lea.vmem [#allocation0], 96
    %s147 = scalar_lea.vmem %s146, 7 [#allocation0]
    %v148 = vld [vmem:[%s147] ss:$-1 sm:$0xff]
    %v149 = vrot.slane %v148, 1
    %150 = vst [vmem:[%s145] sm:$0xff] %v149
    %s151 = scalar_lea.vmem %s146, 8 [#allocation0]
    %s152 = scalar_lea.vmem %s151, 7 [#allocation0]
    %v153 = vld [vmem:[%s152] ss:$-1 sm:$0xff]
    %v154 = vrot.slane %v153, 1
    %v155 = vlaneseq
    %v156 = vshrl.u32 %v155, 7
    %vm157 = vcmp.lt.s32.totalorder %v156, 7
    %158 = vst.msk [vmem:[%s145] sm:$0xff] %vm157, %v154
    %s159 = scalar_lea.vmem [#allocation1], 56
    %s160 = scalar_lea.vmem [#allocation0], 112
    %s161 = scalar_lea.vmem %s160, 7 [#allocation0]
    %v162 = vld [vmem:[%s161] ss:$-1 sm:$0xff]
    %v163 = vrot.slane %v162, 1
    %164 = vst [vmem:[%s159] sm:$0xff] %v163
    %s165 = scalar_lea.vmem %s160, 8 [#allocation0]
    %s166 = scalar_lea.vmem %s165, 7 [#allocation0]
    %v167 = vld [vmem:[%s166] ss:$-1 sm:$0xff]
    %v168 = vrot.slane %v167, 1
    %v169 = vlaneseq
    %v170 = vshrl.u32 %v169, 7
    %vm171 = vcmp.lt.s32.totalorder %v170, 7
    %172 = vst.msk [vmem:[%s159] sm:$0xff] %vm171, %v168
    // Predicated region
    $region36: #{reverse.0} parent=1 // pred_check
      _
    $region37: #{reverse.0} parent=1 // pred_check_branch
      %174 = sbr.rel (0) target = $region39
    $region38: #{reverse.0} parent=1 // pred_region
      // Predicated region
      $region40: #{reverse.0} parent=38 // pred_check
        _
      $region41: #{reverse.0} parent=38 // pred_check_branch
        %176 = sbr.rel (0) target = $region43
      $region42: #{reverse.0} parent=38 // pred_region
        // Predicated region
        $region55: #{reverse.0} parent=42 // pred_check
          _
        $region56: #{reverse.0} parent=42 // pred_check_branch
          %205 = sbr.rel (0) target = $region58
        $region57: #{reverse.0} parent=42 // pred_region
          loop: start=0, step=1, limit=1
          $region59: #{reverse.0} parent=57 // loop_pre_header
            _
          $region60: #{reverse.0} parent=57 // loop_header
            %s207 = sphi 0, %s211
            %p208 = scmp.ge.s32.totalorder %s207, 1
            %s212 = sphi [#allocation1], [#allocation1]
            %s213 = sphi %s1, %s1
          $region61: #{reverse.0} parent=57 // loop_header_branch
            %210 = sbr.rel (%p208) target = $region65
          $region62: #{reverse.0} parent=57 // loop_body
            %v214 = vld [vmem:[%s212] sm:$0xff]
            %215 = vst [vmem:[%s213] sm:$0xff] %v214
            %v216 = vld [vmem:[%s212 + $0x8] sm:$0xff]
            %217 = vst [vmem:[%s213 + $0x8] sm:$0xff] %v216
            %v218 = vld [vmem:[%s212 + $0x10] sm:$0xff]
            %219 = vst [vmem:[%s213 + $0x10] sm:$0xff] %v218
            %v220 = vld [vmem:[%s212 + $0x18] sm:$0xff]
            %221 = vst [vmem:[%s213 + $0x18] sm:$0xff] %v220
            %v222 = vld [vmem:[%s212 + $0x20] sm:$0xff]
            %223 = vst [vmem:[%s213 + $0x20] sm:$0xff] %v222
            %v224 = vld [vmem:[%s212 + $0x28] sm:$0xff]
            %225 = vst [vmem:[%s213 + $0x28] sm:$0xff] %v224
            %v226 = vld [vmem:[%s212 + $0x30] sm:$0xff]
            %227 = vst [vmem:[%s213 + $0x30] sm:$0xff] %v226
            %v228 = vld [vmem:[%s212 + $0x38] sm:$0xff]
            %229 = vst [vmem:[%s213 + $0x38] sm:$0xff] %v228
          $region63: #{reverse.0} parent=57 // loop_footer
            %s211 = sadd.s32 1, %s207
          $region64: #{reverse.0} parent=57 // loop_footer_branch
            %206 = sbr.rel target = $region60
          $region65: #{reverse.0} parent=57 // loop_exit
            _
        $region58: #{reverse.0} parent=42 // pred_fallthru
          _
        // Predicated region
        $region66: #{reverse.0} parent=42 // pred_check
          _
        $region67: #{reverse.0} parent=42 // pred_check_branch
          %231 = sbr.rel target = $region69
        $region68: #{reverse.0} parent=42 // pred_region
          _
        $region69: #{reverse.0} parent=42 // pred_fallthru
          _
      $region43: #{reverse.0} parent=38 // pred_fallthru
        _
      // Predicated region
      $region44: #{reverse.0} parent=38 // pred_check
        _
      $region45: #{reverse.0} parent=38 // pred_check_branch
        %178 = sbr.rel target = $region47
      $region46: #{reverse.0} parent=38 // pred_region
        loop: start=0, step=1, limit=1
        $region48: #{reverse.0} parent=46 // loop_pre_header
          _
        $region49: #{reverse.0} parent=46 // loop_header
          %s181 = sphi 0, %s185
          %p182 = scmp.ge.s32.totalorder %s181, 1
          %s186 = sphi [#allocation1], [#allocation1]
          %s187 = sphi %s1, %s1
        $region50: #{reverse.0} parent=46 // loop_header_branch
          %184 = sbr.rel (%p182) target = $region54
        $region51: #{reverse.0} parent=46 // loop_body
          %v188 = vld [vmem:[%s186] sm:$0xff]
          %189 = vst [vmem:[%s187] sm:$0xff] %v188
          %v190 = vld [vmem:[%s186 + $0x8] sm:$0xff]
          %191 = vst [vmem:[%s187 + $0x8] sm:$0xff] %v190
          %v192 = vld [vmem:[%s186 + $0x10] sm:$0xff]
          %193 = vst [vmem:[%s187 + $0x10] sm:$0xff] %v192
          %v194 = vld [vmem:[%s186 + $0x18] sm:$0xff]
          %195 = vst [vmem:[%s187 + $0x18] sm:$0xff] %v194
          %v196 = vld [vmem:[%s186 + $0x20] sm:$0xff]
          %197 = vst [vmem:[%s187 + $0x20] sm:$0xff] %v196
          %v198 = vld [vmem:[%s186 + $0x28] sm:$0xff]
          %199 = vst [vmem:[%s187 + $0x28] sm:$0xff] %v198
          %v200 = vld [vmem:[%s186 + $0x30] sm:$0xff]
          %201 = vst [vmem:[%s187 + $0x30] sm:$0xff] %v200
          %v202 = vld [vmem:[%s186 + $0x38] sm:$0xff]
          %203 = vst [vmem:[%s187 + $0x38] sm:$0xff] %v202
        $region52: #{reverse.0} parent=46 // loop_footer
          %s185 = sadd.s32 1, %s181
        $region53: #{reverse.0} parent=46 // loop_footer_branch
          %180 = sbr.rel target = $region49
        $region54: #{reverse.0} parent=46 // loop_exit
          _
      $region47: #{reverse.0} parent=38 // pred_fallthru
        _
    $region39: #{reverse.0} parent=1 // pred_fallthru
      _
    %232 = vnop

// kernel: local_fno_block_forward.2
$region0: #{local_fno_block_forward.2}
  #allocation0 [shape = 'u32[]', space=smem, size = 0x4, offset = 0x4, fixed_abs, tag = 'smem constant byte address 0x4 - core index']
  #allocation1 [shape = 'u32[144,128]{1,0:T(1,128)}', space=vmem, size = 0x12000, scoped, tag = 'internal scratch']
  %s0 = inlined_call_operand.vmem [shape: f32[2,4,128], index: 0, kind: input, shape index: {}]
  %s1 = inlined_call_operand.vmem [shape: f32[2,4,128], index: 1, kind: input, shape index: {}]
  %s2 = inlined_call_operand.vmem [shape: f32[4,4,128], index: 2, kind: input, shape index: {}]
  %s3 = inlined_call_operand.vmem [shape: f32[4,4,128], index: 3, kind: input, shape index: {}]
  %s4 = inlined_call_operand.vmem [shape: f32[2,4,128], index: 4, kind: output, shape index: {0}]
  %s5 = inlined_call_operand.vmem [shape: f32[2,4,128], index: 5, kind: output, shape index: {1}]
  %6 = xla_tuple %s4, %s5
  %s7 = sld [smem:[#allocation0]]
  $region34: #{local_fno_block_forward.2} parent=0
    _
  %s9 = ssub.s32 1, %s7
  %s10 = scalar_select 0, %s9, %s7
  // Predicated region
  $region2: #{local_fno_block_forward.2} parent=0 // pred_check
    _
  $region3: #{local_fno_block_forward.2} parent=0 // pred_check_branch
    %12 = sbr.rel (0) target = $region5
  $region4: #{local_fno_block_forward.2} parent=0 // pred_region
    _
  $region5: #{local_fno_block_forward.2} parent=0 // pred_fallthru
    _
  // Predicated region
  $region6: #{local_fno_block_forward.2} parent=0 // pred_check
    _
  $region7: #{local_fno_block_forward.2} parent=0 // pred_check_branch
    %14 = sbr.rel (0) target = $region9
  $region8: #{local_fno_block_forward.2} parent=0 // pred_region
    _
  $region9: #{local_fno_block_forward.2} parent=0 // pred_fallthru
    _
  // Predicated region
  $region10: #{local_fno_block_forward.2} parent=0 // pred_check
    _
  $region11: #{local_fno_block_forward.2} parent=0 // pred_check_branch
    %16 = sbr.rel (0) target = $region13
  $region12: #{local_fno_block_forward.2} parent=0 // pred_region
    _
  $region13: #{local_fno_block_forward.2} parent=0 // pred_fallthru
    _
  // Predicated region
  $region14: #{local_fno_block_forward.2} parent=0 // pred_check
    _
  $region15: #{local_fno_block_forward.2} parent=0 // pred_check_branch
    %18 = sbr.rel (0) target = $region17
  $region16: #{local_fno_block_forward.2} parent=0 // pred_region
    _
  $region17: #{local_fno_block_forward.2} parent=0 // pred_fallthru
    _
  %v19 = vld [vmem:[%s0] sm:$0xf]
  %v20 = vld [vmem:[%s0 + $0x4] sm:$0xf]
  %v24 = vunpack.c.l.s4 1966171168
  %v25 = vunpack.c.0.s8 %v24
  %v26 = vlaneseq
  %v27 = vshrl.u32 %v26, 7
  %v28 = vsub.s32 %v25, %v27
  %v29 = vrot.slane %v19, %v28
  %v30 = vcombine.high %v29, %v29
  %v32 = vunpack.c.l.s4 1966171168
  %v33 = vunpack.c.0.s8 %v32
  %v34 = vlaneseq
  %v35 = vshrl.u32 %v34, 7
  %v36 = vsub.s32 %v33, %v35
  %v37 = vrot.slane %v29, %v36
  %v39 = vunpack.c.l.s4 1966171168
  %v40 = vunpack.c.0.s8 %v39
  %v41 = vlaneseq
  %v42 = vshrl.u32 %v41, 7
  %v43 = vsub.s32 %v40, %v42
  %v44 = vrot.slane %v30, %v43
  %v45 = vcombine.high %v37, %v37
  %v46 = vcombine.high %v44, %v44
  %v48 = vunpack.c.l.s4 1966171168
  %v49 = vunpack.c.0.s8 %v48
  %v50 = vlaneseq
  %v51 = vshrl.u32 %v50, 7
  %v52 = vsub.s32 %v49, %v51
  %v53 = vrot.slane %v20, %v52
  %v54 = vcombine.high %v53, %v53
  %v56 = vunpack.c.l.s4 1966171168
  %v57 = vunpack.c.0.s8 %v56
  %v58 = vlaneseq
  %v59 = vshrl.u32 %v58, 7
  %v60 = vsub.s32 %v57, %v59
  %v61 = vrot.slane %v53, %v60
  %v63 = vunpack.c.l.s4 1966171168
  %v64 = vunpack.c.0.s8 %v63
  %v65 = vlaneseq
  %v66 = vshrl.u32 %v65, 7
  %v67 = vsub.s32 %v64, %v66
  %v68 = vrot.slane %v54, %v67
  %v69 = vcombine.high %v61, %v61
  %v70 = vcombine.high %v68, %v68
  %v79 = vld [vmem:[%s1] sm:$0xf]
  %v80 = vld [vmem:[%s1 + $0x4] sm:$0xf]
  %v84 = vunpack.c.l.s4 1966171168
  %v85 = vunpack.c.0.s8 %v84
  %v86 = vlaneseq
  %v87 = vshrl.u32 %v86, 7
  %v88 = vsub.s32 %v85, %v87
  %v89 = vrot.slane %v79, %v88
  %v90 = vcombine.high %v89, %v89
  %v92 = vunpack.c.l.s4 1966171168
  %v93 = vunpack.c.0.s8 %v92
  %v94 = vlaneseq
  %v95 = vshrl.u32 %v94, 7
  %v96 = vsub.s32 %v93, %v95
  %v97 = vrot.slane %v89, %v96
  %v99 = vunpack.c.l.s4 1966171168
  %v100 = vunpack.c.0.s8 %v99
  %v101 = vlaneseq
  %v102 = vshrl.u32 %v101, 7
  %v103 = vsub.s32 %v100, %v102
  %v104 = vrot.slane %v90, %v103
  %v105 = vcombine.high %v97, %v97
  %v106 = vcombine.high %v104, %v104
  %v108 = vunpack.c.l.s4 1966171168
  %v109 = vunpack.c.0.s8 %v108
  %v110 = vlaneseq
  %v111 = vshrl.u32 %v110, 7
  %v112 = vsub.s32 %v109, %v111
  %v113 = vrot.slane %v80, %v112
  %v114 = vcombine.high %v113, %v113
  %v116 = vunpack.c.l.s4 1966171168
  %v117 = vunpack.c.0.s8 %v116
  %v118 = vlaneseq
  %v119 = vshrl.u32 %v118, 7
  %v120 = vsub.s32 %v117, %v119
  %v121 = vrot.slane %v113, %v120
  %v123 = vunpack.c.l.s4 1966171168
  %v124 = vunpack.c.0.s8 %v123
  %v125 = vlaneseq
  %v126 = vshrl.u32 %v125, 7
  %v127 = vsub.s32 %v124, %v126
  %v128 = vrot.slane %v114, %v127
  %v129 = vcombine.high %v121, %v121
  %v130 = vcombine.high %v128, %v128
  %v139 = vld [vmem:[%s2] sm:$0xf]
  %v140 = vld [vmem:[%s2 + $0x4] sm:$0xf]
  %v141 = vld [vmem:[%s2 + $0x8] sm:$0xf]
  %v142 = vld [vmem:[%s2 + $0xc] sm:$0xf]
  %v143 = vld [vmem:[%s3] sm:$0xf]
  %v144 = vld [vmem:[%s3 + $0x4] sm:$0xf]
  %v145 = vld [vmem:[%s3 + $0x8] sm:$0xf]
  %v146 = vld [vmem:[%s3 + $0xc] sm:$0xf]
  %v147 = vadd.f32 %v37, %v97
  %v148 = vadd.f32 %v44, %v104
  %v149 = vadd.f32 %v45, %v105
  %v150 = vadd.f32 %v46, %v106
  %v151 = vadd.f32 %v61, %v121
  %v152 = vadd.f32 %v68, %v128
  %v153 = vadd.f32 %v69, %v129
  %v154 = vadd.f32 %v70, %v130
  %v163 = vlaneseq
  %v164 = vshrl.u32 %v163, 7
  %v165 = vsub.s32 0, %v164
  %v166 = vrot.slane %v147, %v165
  %v167 = vlaneseq
  %v168 = vshrl.u32 %v167, 7
  %v169 = vsub.s32 0, %v168
  %v170 = vrot.slane %v148, %v169
  %v171 = vlaneseq
  %v172 = vshrl.u32 %v171, 7
  %v173 = vsub.s32 0, %v172
  %v174 = vrot.slane %v149, %v173
  %v175 = vlaneseq
  %v176 = vshrl.u32 %v175, 7
  %v177 = vsub.s32 0, %v176
  %v178 = vrot.slane %v150, %v177
  %v179 = vlaneseq
  %v180 = vshrl.u32 %v179, 7
  %v181 = vsub.s32 0, %v180
  %v182 = vrot.slane %v151, %v181
  %v183 = vlaneseq
  %v184 = vshrl.u32 %v183, 7
  %v185 = vsub.s32 0, %v184
  %v186 = vrot.slane %v152, %v185
  %v187 = vlaneseq
  %v188 = vshrl.u32 %v187, 7
  %v189 = vsub.s32 0, %v188
  %v190 = vrot.slane %v153, %v189
  %v191 = vlaneseq
  %v192 = vshrl.u32 %v191, 7
  %v193 = vsub.s32 0, %v192
  %v194 = vrot.slane %v154, %v193
  %v203 = vmul.f32 %v139, %v166
  %v204 = vmul.f32 %v140, %v170
  %v205 = vmul.f32 %v141, %v174
  %v206 = vmul.f32 %v142, %v178
  %v207 = vmul.f32 %v139, %v182
  %v208 = vmul.f32 %v140, %v186
  %v209 = vmul.f32 %v141, %v190
  %v210 = vmul.f32 %v142, %v194
  %vm211 = vcmask 1043456
  %v212 = vsel %vm211, %v203, 0.0
  %v213 = vsel %vm211, %v204, 0.0
  %v214 = vadd.f32 %v212, %v213
  %v215 = vsel %vm211, %v205, 0.0
  %v216 = vadd.f32 %v214, %v215
  %v217 = vsel %vm211, %v206, 0.0
  %v218 = vadd.f32 %v216, %v217
  %v219 = vsel %vm211, %v207, 0.0
  %v220 = vsel %vm211, %v208, 0.0
  %v221 = vadd.f32 %v219, %v220
  %v222 = vsel %vm211, %v209, 0.0
  %v223 = vadd.f32 %v221, %v222
  %v224 = vsel %vm211, %v210, 0.0
  %v225 = vadd.f32 %v223, %v224
  %v226 = vsub.f32 %v143, %v139
  %v227 = vsub.f32 %v144, %v140
  %v228 = vsub.f32 %v145, %v141
  %v229 = vsub.f32 %v146, %v142
  %v230 = vlaneseq
  %v231 = vshrl.u32 %v230, 7
  %v232 = vsub.s32 0, %v231
  %v233 = vrot.slane %v37, %v232
  %v234 = vlaneseq
  %v235 = vshrl.u32 %v234, 7
  %v236 = vsub.s32 0, %v235
  %v237 = vrot.slane %v44, %v236
  %v238 = vlaneseq
  %v239 = vshrl.u32 %v238, 7
  %v240 = vsub.s32 0, %v239
  %v241 = vrot.slane %v45, %v240
  %v242 = vlaneseq
  %v243 = vshrl.u32 %v242, 7
  %v244 = vsub.s32 0, %v243
  %v245 = vrot.slane %v46, %v244
  %v246 = vlaneseq
  %v247 = vshrl.u32 %v246, 7
  %v248 = vsub.s32 0, %v247
  %v249 = vrot.slane %v61, %v248
  %v250 = vlaneseq
  %v251 = vshrl.u32 %v250, 7
  %v252 = vsub.s32 0, %v251
  %v253 = vrot.slane %v68, %v252
  %v254 = vlaneseq
  %v255 = vshrl.u32 %v254, 7
  %v256 = vsub.s32 0, %v255
  %v257 = vrot.slane %v69, %v256
  %v258 = vlaneseq
  %v259 = vshrl.u32 %v258, 7
  %v260 = vsub.s32 0, %v259
  %v261 = vrot.slane %v70, %v260
  %v270 = vmul.f32 %v233, %v226
  %v271 = vmul.f32 %v237, %v227
  %v272 = vmul.f32 %v241, %v228
  %v273 = vmul.f32 %v245, %v229
  %v274 = vmul.f32 %v249, %v226
  %v275 = vmul.f32 %v253, %v227
  %v276 = vmul.f32 %v257, %v228
  %v277 = vmul.f32 %v261, %v229
  %v278 = vsel %vm211, %v270, 0.0
  %v279 = vsel %vm211, %v271, 0.0
  %v280 = vadd.f32 %v278, %v279
  %v281 = vsel %vm211, %v272, 0.0
  %v282 = vadd.f32 %v280, %v281
  %v283 = vsel %vm211, %v273, 0.0
  %v284 = vadd.f32 %v282, %v283
  %v285 = vsel %vm211, %v274, 0.0
  %v286 = vsel %vm211, %v275, 0.0
  %v287 = vadd.f32 %v285, %v286
  %v288 = vsel %vm211, %v276, 0.0
  %v289 = vadd.f32 %v287, %v288
  %v290 = vsel %vm211, %v277, 0.0
  %v291 = vadd.f32 %v289, %v290
  %v292 = vadd.f32 %v139, %v143
  %v293 = vadd.f32 %v140, %v144
  %v294 = vadd.f32 %v141, %v145
  %v295 = vadd.f32 %v142, %v146
  %v296 = vlaneseq
  %v297 = vshrl.u32 %v296, 7
  %v298 = vsub.s32 0, %v297
  %v299 = vrot.slane %v97, %v298
  %v300 = vlaneseq
  %v301 = vshrl.u32 %v300, 7
  %v302 = vsub.s32 0, %v301
  %v303 = vrot.slane %v104, %v302
  %v304 = vlaneseq
  %v305 = vshrl.u32 %v304, 7
  %v306 = vsub.s32 0, %v305
  %v307 = vrot.slane %v105, %v306
  %v308 = vlaneseq
  %v309 = vshrl.u32 %v308, 7
  %v310 = vsub.s32 0, %v309
  %v311 = vrot.slane %v106, %v310
  %v312 = vlaneseq
  %v313 = vshrl.u32 %v312, 7
  %v314 = vsub.s32 0, %v313
  %v315 = vrot.slane %v121, %v314
  %v316 = vlaneseq
  %v317 = vshrl.u32 %v316, 7
  %v318 = vsub.s32 0, %v317
  %v319 = vrot.slane %v128, %v318
  %v320 = vlaneseq
  %v321 = vshrl.u32 %v320, 7
  %v322 = vsub.s32 0, %v321
  %v323 = vrot.slane %v129, %v322
  %v324 = vlaneseq
  %v325 = vshrl.u32 %v324, 7
  %v326 = vsub.s32 0, %v325
  %v327 = vrot.slane %v130, %v326
  %v336 = vmul.f32 %v299, %v292
  %v337 = vmul.f32 %v303, %v293
  %v338 = vmul.f32 %v307, %v294
  %v339 = vmul.f32 %v311, %v295
  %v340 = vmul.f32 %v315, %v292
  %v341 = vmul.f32 %v319, %v293
  %v342 = vmul.f32 %v323, %v294
  %v343 = vmul.f32 %v327, %v295
  %v344 = vsel %vm211, %v336, 0.0
  %v345 = vsel %vm211, %v337, 0.0
  %v346 = vadd.f32 %v344, %v345
  %v347 = vsel %vm211, %v338, 0.0
  %v348 = vadd.f32 %v346, %v347
  %v349 = vsel %vm211, %v339, 0.0
  %v350 = vadd.f32 %v348, %v349
  %v351 = vsel %vm211, %v340, 0.0
  %v352 = vsel %vm211, %v341, 0.0
  %v353 = vadd.f32 %v351, %v352
  %v354 = vsel %vm211, %v342, 0.0
  %v355 = vadd.f32 %v353, %v354
  %v356 = vsel %vm211, %v343, 0.0
  %v357 = vadd.f32 %v355, %v356
  %v358 = vsub.f32 %v218, %v350
  %v359 = vsub.f32 %v225, %v357
  %360 = vst [vmem:[%s4] sm:$0xf] %v358
  %361 = vst [vmem:[%s4 + $0x4] sm:$0xf] %v359
  %v362 = vadd.f32 %v218, %v284
  %v363 = vadd.f32 %v225, %v291
  %364 = vst [vmem:[%s5] sm:$0xf] %v362
  %365 = vst [vmem:[%s5 + $0x4] sm:$0xf] %v363
  // Predicated region
  $region18: #{local_fno_block_forward.2} parent=0 // pred_check
    _
  $region19: #{local_fno_block_forward.2} parent=0 // pred_check_branch
    %367 = sbr.rel (0) target = $region21
  $region20: #{local_fno_block_forward.2} parent=0 // pred_region
    _
  $region21: #{local_fno_block_forward.2} parent=0 // pred_fallthru
    _
  // Predicated region
  $region22: #{local_fno_block_forward.2} parent=0 // pred_check
    _
  $region23: #{local_fno_block_forward.2} parent=0 // pred_check_branch
    %369 = sbr.rel (0) target = $region25
  $region24: #{local_fno_block_forward.2} parent=0 // pred_region
    _
  $region25: #{local_fno_block_forward.2} parent=0 // pred_fallthru
    _
  // Predicated region
  $region26: #{local_fno_block_forward.2} parent=0 // pred_check
    _
  $region27: #{local_fno_block_forward.2} parent=0 // pred_check_branch
    %371 = sbr.rel (0) target = $region29
  $region28: #{local_fno_block_forward.2} parent=0 // pred_region
    _
  $region29: #{local_fno_block_forward.2} parent=0 // pred_fallthru
    _
  // Predicated region
  $region30: #{local_fno_block_forward.2} parent=0 // pred_check
    _
  $region31: #{local_fno_block_forward.2} parent=0 // pred_check_branch
    %373 = sbr.rel (0) target = $region33
  $region32: #{local_fno_block_forward.2} parent=0 // pred_region
    _
  $region33: #{local_fno_block_forward.2} parent=0 // pred_fallthru
    _

// kernel: local_fno_block_forward.3
$region0: #{local_fno_block_forward.3}
  #allocation0 [shape = 'u32[]', space=smem, size = 0x4, offset = 0x4, fixed_abs, tag = 'smem constant byte address 0x4 - core index']
  #allocation1 [shape = 'u32[144,128]{1,0:T(1,128)}', space=vmem, size = 0x12000, scoped, tag = 'internal scratch']
  %s0 = inlined_call_operand.vmem [shape: f32[2,4,256], index: 0, kind: input, shape index: {}]
  %s1 = inlined_call_operand.vmem [shape: f32[2,4,256], index: 1, kind: input, shape index: {}]
  %s2 = inlined_call_operand.vmem [shape: f32[4,36], index: 2, kind: input, shape index: {}]
  %s3 = inlined_call_operand.vmem [shape: f32[4,1], index: 3, kind: input, shape index: {}]
  %s4 = inlined_call_operand.vmem [shape: f32[2,4,256], index: 4, kind: output, shape index: {}]
  %s5 = sld [smem:[#allocation0]]
  $region49: #{local_fno_block_forward.3} parent=0
    _
  %s7 = ssub.s32 1, %s5
  %s8 = scalar_select 0, %s7, %s5
  loop: start=0, step=1, limit=4
  $region2: #{local_fno_block_forward.3} parent=0 // loop_pre_header
    _
  $region3: #{local_fno_block_forward.3} parent=0 // loop_header
    %s10 = sphi 0, %s14
    %p11 = scmp.ge.s32.totalorder %s10, 4
    %s20 = sphi 0, %s22
    %s23 = sphi 0, %s20
    %s24 = sphi 0, %s23
    %s40 = sphi 0, %s24
    %s46 = sphi 0, %s48
    %s49 = sphi 0, %s46
    %s50 = sphi 0, %s49
    %s66 = sphi 0, %s50
    %s70 = sphi 0, %s70
    %s72 = sphi 0, %s70
    %s73 = sphi 0, %s72
    %s87 = sphi 0, %s73
    %s91 = sphi 0, %s91
    %s93 = sphi 0, %s91
    %s94 = sphi 0, %s93
    %s108 = sphi 0, %s94
    %s114 = sphi 0, %s116
    %s117 = sphi 0, %s114
    %s118 = sphi 0, %s117
    %s134 = sphi 0, %s118
  $region4: #{local_fno_block_forward.3} parent=0 // loop_header_branch
    %13 = sbr.rel (%p11) target = $region8
  $region5: #{local_fno_block_forward.3} parent=0 // loop_body
    %s15 = ssub.s32 %s10, 1
    %s16 = ssub.s32 %s10, 2
    %s17 = sadd.s32 %s10, 1
    %s18 = ssub.s32 %s10, %s17
    %p19 = scmp.eq.s32.totalorder %s18, 0
    %s21 = sadd.s32 %s20, 1
    %s22 = scalar_select %p19, %s20, %s21
    %p25 = pneg %p19
    %p26 = scmp.eq.s32.totalorder %s10, 1
    %p27 = por %p25, %p26
    %p28 = scmp.ne.s32.totalorder %s20, %s23
    %p29 = scmp.eq.s32.totalorder %s10, 0
    %p30 = por %p28, %p29
    %p31 = scmp.ne.s32.totalorder %s20, %s23
    %p32 = scmp.eq.s32.totalorder %s15, 1
    %p33 = por %p31, %p32
    %p34 = scmp.ne.s32.totalorder %s23, %s24
    %p35 = scmp.eq.s32.totalorder %s15, 0
    %p36 = por %p34, %p35
    %p37 = scmp.ne.s32.totalorder %s23, %s24
    %p38 = scmp.eq.s32.totalorder %s16, 1
    %p39 = por %p37, %p38
    %p41 = scmp.ne.s32.totalorder %s24, %s40
    %p42 = scmp.eq.s32.totalorder %s16, 0
    %p43 = por %p41, %p42
    %s44 = ssub.s32 %s10, %s17
    %p45 = scmp.eq.s32.totalorder %s44, 0
    %s47 = sadd.s32 %s46, 1
    %s48 = scalar_select %p45, %s46, %s47
    %p51 = pneg %p45
    %p52 = scmp.eq.s32.totalorder %s10, 1
    %p53 = por %p51, %p52
    %p54 = scmp.ne.s32.totalorder %s46, %s49
    %p55 = scmp.eq.s32.totalorder %s10, 0
    %p56 = por %p54, %p55
    %p57 = scmp.ne.s32.totalorder %s46, %s49
    %p58 = scmp.eq.s32.totalorder %s15, 1
    %p59 = por %p57, %p58
    %p60 = scmp.ne.s32.totalorder %s49, %s50
    %p61 = scmp.eq.s32.totalorder %s15, 0
    %p62 = por %p60, %p61
    %p63 = scmp.ne.s32.totalorder %s49, %s50
    %p64 = scmp.eq.s32.totalorder %s16, 1
    %p65 = por %p63, %p64
    %p67 = scmp.ne.s32.totalorder %s50, %s66
    %p68 = scmp.eq.s32.totalorder %s16, 0
    %p69 = por %p67, %p68
    %s71 = sadd.s32 %s70, 1
    %p74 = scmp.eq.s32.totalorder %s10, 1
    %p75 = scmp.ne.s32.totalorder %s70, %s72
    %p76 = scmp.eq.s32.totalorder %s10, 0
    %p77 = por %p75, %p76
    %p78 = scmp.ne.s32.totalorder %s70, %s72
    %p79 = scmp.eq.s32.totalorder %s15, 1
    %p80 = por %p78, %p79
    %p81 = scmp.ne.s32.totalorder %s72, %s73
    %p82 = scmp.eq.s32.totalorder %s15, 0
    %p83 = por %p81, %p82
    %p84 = scmp.ne.s32.totalorder %s72, %s73
    %p85 = scmp.eq.s32.totalorder %s16, 1
    %p86 = por %p84, %p85
    %p88 = scmp.ne.s32.totalorder %s73, %s87
    %p89 = scmp.eq.s32.totalorder %s16, 0
    %p90 = por %p88, %p89
    %s92 = sadd.s32 %s91, 1
    %p95 = scmp.eq.s32.totalorder %s10, 1
    %p96 = scmp.ne.s32.totalorder %s91, %s93
    %p97 = scmp.eq.s32.totalorder %s10, 0
    %p98 = por %p96, %p97
    %p99 = scmp.ne.s32.totalorder %s91, %s93
    %p100 = scmp.eq.s32.totalorder %s15, 1
    %p101 = por %p99, %p100
    %p102 = scmp.ne.s32.totalorder %s93, %s94
    %p103 = scmp.eq.s32.totalorder %s15, 0
    %p104 = por %p102, %p103
    %p105 = scmp.ne.s32.totalorder %s93, %s94
    %p106 = scmp.eq.s32.totalorder %s16, 1
    %p107 = por %p105, %p106
    %p109 = scmp.ne.s32.totalorder %s94, %s108
    %p110 = scmp.eq.s32.totalorder %s16, 0
    %p111 = por %p109, %p110
    %s112 = ssub.s32 %s10, %s17
    %p113 = scmp.eq.s32.totalorder %s112, 0
    %s115 = sadd.s32 %s114, 1
    %s116 = scalar_select %p113, %s114, %s115
    %p119 = pneg %p113
    %p120 = scmp.eq.s32.totalorder %s10, 1
    %p121 = por %p119, %p120
    %p122 = scmp.ne.s32.totalorder %s114, %s117
    %p123 = scmp.eq.s32.totalorder %s10, 0
    %p124 = por %p122, %p123
    %p125 = scmp.ne.s32.totalorder %s114, %s117
    %p126 = scmp.eq.s32.totalorder %s15, 1
    %p127 = por %p125, %p126
    %p128 = scmp.ne.s32.totalorder %s117, %s118
    %p129 = scmp.eq.s32.totalorder %s15, 0
    %p130 = por %p128, %p129
    %p131 = scmp.ne.s32.totalorder %s117, %s118
    %p132 = scmp.eq.s32.totalorder %s16, 1
    %p133 = por %p131, %p132
    %p135 = scmp.ne.s32.totalorder %s118, %s134
    %p136 = scmp.eq.s32.totalorder %s16, 0
    %p137 = por %p135, %p136
    %p138 = scmp.le.s32.totalorder 1, %s10
    %p139 = scmp.lt.s32.totalorder %s10, 3
    %p140 = pnand %p138, %p139
    %p141 = pneg %p140
    // Predicated region
    $region9: #{local_fno_block_forward.3} parent=5 // pred_check
      _
    $region10: #{local_fno_block_forward.3} parent=5 // pred_check_branch
      %143 = sbr.rel (%p140) target = $region12
    $region11: #{local_fno_block_forward.3} parent=5 // pred_region
      %s144 = ssub.s32 %s10, 1
      // Predicated region
      $region13: #{local_fno_block_forward.3} parent=11 // pred_check
        %p145 = pneg %p83
      $region14: #{local_fno_block_forward.3} parent=11 // pred_check_branch
        %147 = sbr.rel (%p145) target = $region16
      $region15: #{local_fno_block_forward.3} parent=11 // pred_region
        _
      $region16: #{local_fno_block_forward.3} parent=11 // pred_fallthru
        _
      // Predicated region
      $region17: #{local_fno_block_forward.3} parent=11 // pred_check
        %p148 = pneg %p104
      $region18: #{local_fno_block_forward.3} parent=11 // pred_check_branch
        %150 = sbr.rel (%p148) target = $region20
      $region19: #{local_fno_block_forward.3} parent=11 // pred_region
        _
      $region20: #{local_fno_block_forward.3} parent=11 // pred_fallthru
        _
    $region12: #{local_fno_block_forward.3} parent=5 // pred_fallthru
      _
    %p151 = scmp.lt.s32.totalorder %s10, 2
    // Predicated region
    $region21: #{local_fno_block_forward.3} parent=5 // pred_check
      %p152 = pneg %p151
    $region22: #{local_fno_block_forward.3} parent=5 // pred_check_branch
      %154 = sbr.rel (%p152) target = $region24
    $region23: #{local_fno_block_forward.3} parent=5 // pred_region
      // Predicated region
      $region25: #{local_fno_block_forward.3} parent=23 // pred_check
        %p155 = pneg %p30
      $region26: #{local_fno_block_forward.3} parent=23 // pred_check_branch
        %157 = sbr.rel (%p155) target = $region28
      $region27: #{local_fno_block_forward.3} parent=23 // pred_region
        %p158 = scmp.lt.s32.totalorder %s10, 1
        %s159 = scalar_select %p158, %s10, 1
        %s160 = smul.addr %s159, 2
        %s161 = smul.addr %s160, 4
        %s162 = scalar_lea.vmem %s0, %s161
      $region28: #{local_fno_block_forward.3} parent=23 // pred_fallthru
        _
      // Predicated region
      $region29: #{local_fno_block_forward.3} parent=23 // pred_check
        %p163 = pneg %p56
      $region30: #{local_fno_block_forward.3} parent=23 // pred_check_branch
        %165 = sbr.rel (%p163) target = $region32
      $region31: #{local_fno_block_forward.3} parent=23 // pred_region
        %p166 = scmp.lt.s32.totalorder %s10, 1
        %s167 = scalar_select %p166, %s10, 1
        %s168 = smul.addr %s167, 2
        %s169 = smul.addr %s168, 4
        %s170 = scalar_lea.vmem %s1, %s169
      $region32: #{local_fno_block_forward.3} parent=23 // pred_fallthru
        _
    $region24: #{local_fno_block_forward.3} parent=5 // pred_fallthru
      _
    %p171 = scmp.le.s32.totalorder 1, %s10
    %p172 = scmp.lt.s32.totalorder %s10, 3
    %p173 = pnand %p171, %p172
    %p174 = pneg %p173
    // Predicated region
    $region33: #{local_fno_block_forward.3} parent=5 // pred_check
      _
    $region34: #{local_fno_block_forward.3} parent=5 // pred_check_branch
      %176 = sbr.rel (%p173) target = $region36
    $region35: #{local_fno_block_forward.3} parent=5 // pred_region
      %s177 = ssub.s32 %s10, 1
      %p178 = scmp.lt.s32.totalorder %s15, 1
      %s179 = scalar_select %p178, %s15, 1
      %s180 = smul.addr %s179, 2
      %s181 = smul.addr %s180, 4
      %s182 = scalar_lea.vmem %s0, %s181
      %p183 = pneg %p36
      %p184 = pneg %p33
      %p185 = scmp.lt.s32.totalorder %s15, 1
      %s186 = scalar_select %p185, %s15, 1
      %s187 = smul.addr %s186, 2
      %s188 = smul.addr %s187, 4
      %s189 = scalar_lea.vmem %s1, %s188
      %p190 = pneg %p62
      %p191 = pneg %p59
      %p192 = pneg %p83
      %p193 = pneg %p80
      %p194 = pneg %p104
      %p195 = pneg %p101
      %p196 = pneg %p130
      %p197 = pneg %p127
      %p198 = scmp.lt.s32.totalorder %s15, 1
      %s199 = scalar_select %p198, %s15, 1
      %s200 = smul.addr %s199, 2
      %s201 = smul.addr %s200, 4
      %s202 = scalar_lea.vmem %s4, %s201
      %p203 = scmp.lt.s32.totalorder %s15, 1
      %s204 = scalar_select %p203, %s15, 1
      %s205 = smul.addr %s204, 2
      %s206 = smul.addr %s205, 4
      %s207 = scalar_lea.vmem %s0, %s206
      %p208 = scmp.lt.s32.totalorder %s15, 1
      %s209 = scalar_select %p208, %s15, 1
      %s210 = smul.addr %s209, 2
      %s211 = smul.addr %s210, 4
      %s212 = scalar_lea.vmem %s1, %s211
      %p213 = scmp.lt.s32.totalorder %s15, 1
      %s214 = scalar_select %p213, %s15, 1
      %s215 = smul.addr %s214, 2
      %s216 = smul.addr %s215, 4
      %s217 = scalar_lea.vmem %s4, %s216
      %v219 = vld [vmem:[%s207] sm:$0xff]
      %v220 = vlaneseq
      %v221 = vand.u32 %v220, 127
      %v222 = vadd.s32 %v221, 128
      %vm223 = vcmp.lt.s32.totalorder %v221, 0
      %v224 = vsub.s32 0, %v221
      %v225 = vsel %vm223, %v224, %v221
      %v226 = vshrl.u32 %v225, 4
      %v227 = vand.u32 %v225, 15
      %v228 = vsub.s32 0, %v227
      %v229 = vsel %vm223, %v228, %v227
      %vm230 = vcmp.lt.s32.totalorder %v222, 0
      %v231 = vsub.s32 0, %v222
      %v232 = vsel %vm230, %v231, %v222
      %v233 = vshrl.u32 %v232, 4
      %v234 = vand.u32 %v232, 15
      %v235 = vsub.s32 0, %v234
      %v236 = vsel %vm230, %v235, %v234
      %vm237 = vcmp.ne.s32.totalorder %v229, 0
      %vm238 = vcmp.ne.s32.totalorder %v236, 0
      %vm239 = vcmp.lt.s32.totalorder %v229, 0
      %vm240 = vcmp.lt.s32.totalorder %v236, 0
      %vm241 = vmand %vm239, %vm237
      %vm242 = vmand %vm240, %vm238
      %v243 = vadd.s32 %v229, 16
      %v244 = vadd.s32 %v236, 16
      %v245 = vsel %vm241, %v243, %v229
      %v246 = vsel %vm242, %v244, %v236
      %vm247 = vcmp.eq.s32.totalorder %v245, 0
      %vm248 = vcmp.eq.s32.totalorder %v246, 0
      %v250 = vcombine.high %v219, %v219
      %252 = vrot.lane.b32.xlu0 %v219, 113
      %v253 = vpop.permute.xlu0 %252
      %254 = vrot.lane.b32.xlu0 %v250, 113
      %v255 = vpop.permute.xlu0 %254
      %vm256 = vcmp.lt.s32.totalorder %v221, 113
      %v257 = vsel %vm256, %v253, %v255
      %v258 = vsel %vm256, %v255, %v253
      %259 = vrot.lane.b32.xlu0 %v219, 1
      %v260 = vpop.permute.xlu0 %259
      %261 = vrot.lane.b32.xlu0 %v250, 1
      %v262 = vpop.permute.xlu0 %261
      %vm263 = vcmp.lt.s32.totalorder %v221, 1
      %v264 = vsel %vm263, %v260, %v262
      %v265 = vsel %vm263, %v262, %v260
      %v266 = vsel %vm247, %v257, %v265
      %v267 = vsel %vm248, %v258, %v264
      %vm268 = vcmp.eq.s32.totalorder %v245, 15
      %vm269 = vcmp.eq.s32.totalorder %v246, 15
      %270 = vrot.lane.b32.xlu0 %v219, 15
      %v271 = vpop.permute.xlu0 %270
      %272 = vrot.lane.b32.xlu0 %v250, 15
      %v273 = vpop.permute.xlu0 %272
      %vm274 = vcmp.lt.s32.totalorder %v221, 15
      %v275 = vsel %vm274, %v271, %v273
      %v276 = vsel %vm274, %v273, %v271
      %277 = vrot.lane.b32.xlu0 %v219, 127
      %v278 = vpop.permute.xlu0 %277
      %279 = vrot.lane.b32.xlu0 %v250, 127
      %v280 = vpop.permute.xlu0 %279
      %vm281 = vcmp.lt.s32.totalorder %v221, 127
      %v282 = vsel %vm281, %v278, %v280
      %v283 = vsel %vm281, %v280, %v278
      %v284 = vsel %vm268, %v276, %v282
      %v285 = vsel %vm269, %v275, %v283
      %v286 = vcombine.low %v219, %v219
      %vm288 = vcmask 1043456
      %v289 = vsel %vm288, %v266, %v286
      %v290 = vsel %vm288, %v267, %v219
      %291 = vrot.lane.b32.xlu0 %v289, 16
      %v292 = vpop.permute.xlu0 %291
      %293 = vrot.lane.b32.xlu0 %v284, 16
      %v294 = vpop.permute.xlu0 %293
      %295 = vrot.lane.b32.xlu0 %v290, 16
      %v296 = vpop.permute.xlu0 %295
      %297 = vrot.lane.b32.xlu0 %v285, 16
      %v298 = vpop.permute.xlu0 %297
      %vm299 = vcmp.lt.s32.totalorder %v221, 16
      %v300 = vsel %vm299, %v292, %v296
      %v301 = vsel %vm299, %v294, %v298
      %v302 = vsel %vm299, %v296, %v292
      %v303 = vsel %vm299, %v298, %v294
      %304 = vrot.lane.b32.xlu0 %v289, 112
      %v305 = vpop.permute.xlu0 %304
      %306 = vrot.lane.b32.xlu0 %v284, 112
      %v307 = vpop.permute.xlu0 %306
      %308 = vrot.lane.b32.xlu0 %v290, 112
      %v309 = vpop.permute.xlu0 %308
      %310 = vrot.lane.b32.xlu0 %v285, 112
      %v311 = vpop.permute.xlu0 %310
      %vm312 = vcmp.lt.s32.totalorder %v221, 112
      %v313 = vsel %vm312, %v305, %v309
      %v314 = vsel %vm312, %v307, %v311
      %v315 = vsel %vm312, %v309, %v305
      %v316 = vsel %vm312, %v311, %v307
      %v321 = vrot.slane %v289, 4
      %v322 = vrot.slane %v290, 4
      %v323 = vrot.slane %v284, 4
      %v324 = vsel %vm288, %v321, %v323
      %v325 = vrot.slane %v285, 4
      %v326 = vsel %vm288, %v322, %v325
      %v331 = vsel %vm288, %v303, %v321
      %v332 = vsel %vm288, %v301, %v322
      %v333 = vld [vmem:[%s2] sm:$0xf]
      %v334 = vpack.c.bf16 %v333, %v333
      %v335 = vpack.c.bf16 %v331, %v302
      %v336 = vpack.c.bf16 %v332, %v300
      %v337 = vpack.c.bf16 %v313, %v324
      %v338 = vpack.c.bf16 %v315, %v326
      %v339 = vpack.c.bf16 %v314, %v314
      %v340 = vpack.c.bf16 %v316, %v316
      %v341 = vld [vmem:[%s212] sm:$0xff]
      %v343 = vcombine.high %v341, %v341
      %vm345 = vcmask 293888
      %v347 = vsel %vm345, %v334, 0
      %vm349 = vcmask 1041408
      %v351 = vsel %vm349, %v339, 0
      %v354 = vsel %vm349, %v340, 0
      %356 = vmatprep.subr.bf16.mxu0 %v336
      %357 = vmatpush1.bf16.msra.mxu0 %v335
      %358 = vmatprep.subr.bf16.mxu0 %v338
      %359 = vmatpush1.bf16.msra.mxu0 %v337
      %360 = vmatprep.subr.bf16.mxu0 %v354
      %361 = vmatpush1.bf16.msra.mxu0 %v351
      %362 = vmatprep.subr.bf16.mxu0 0
      %363 = vmatpush1.bf16.msra.mxu0 0
      %364 = vmatprep.subr.bf16.mxu0 0
      %365 = vmatpush1.bf16.msra.mxu0 0
      %366 = vmatprep.subr.bf16.mxu0 0
      %367 = vmatpush1.bf16.msra.mxu0 0
      %368 = vmatprep.subr.bf16.mxu0 0
      %369 = vmatpush1.bf16.msra.mxu0 0
      %370 = vmatprep.subr.bf16.mxu0 0
      %371 = vmatpush1.bf16.msra.mxu0 0
      %372 = vmatprep.subr.bf16.mxu0 0
      %373 = vmatpush1.bf16.msra.mxu0 0
      %374 = vmatprep.subr.bf16.mxu0 0
      %375 = vmatpush1.bf16.msra.mxu0 0
      %376 = vmatprep.subr.bf16.mxu0 0
      %377 = vmatpush1.bf16.msra.mxu0 0
      %378 = vmatprep.subr.bf16.mxu0 0
      %379 = vmatpush1.bf16.msra.mxu0 0
      %380 = vmatprep.subr.bf16.mxu0 0
      %381 = vmatpush1.bf16.msra.mxu0 0
      %382 = vmatprep.subr.bf16.mxu0 0
      %383 = vmatpush1.bf16.msra.mxu0 0
      %384 = vmatprep.subr.bf16.mxu0 0
      %385 = vmatpush1.bf16.msra.mxu0 0
      %386 = vmatprep.subr.bf16.mxu0 0
      %387 = vmatpush1.bf16.msra.mxu0 0
      %388 = vmatprep.mubr.bf16.mxu0 0
      %389 = vmatmul.mubr.bf16.gmra.mrb[0].mxu0 %v347
      %v390 = vpop.f32.mrb[0].mxu0
      %v391 = vadd.f32 %v341, %v390
      %v392 = vpop.f32.mrb[0].mxu0
      %v393 = vadd.f32 %v343, %v392
      %v394 = vpop.f32.mrb[0].mxu0
      %v395 = vpop.f32.mrb[0].mxu0
      %396 = vdwg.mxu0
      %v397 = vld [vmem:[%s3] sm:$0xf]
      %399 = vset.pattern.permute.xlu0 0
      %400 = vperm.xlu0 %399, %v397
      %v401 = vpop.permute.xlu0 %400
      %v403 = vadd.f32 %v391, %v401
      %v404 = vadd.f32 %v393, %v401
      %v407 = vcombine.low %v403, %v404
      %409 = vst [vmem:[%s217] sm:$0xff] %v407
      %p410 = scmp.lt.s32.totalorder %s15, 1
      %s411 = scalar_select %p410, %s15, 1
      %s412 = smul.addr %s411, 2
      %s413 = smul.addr %s412, 4
      %s414 = scalar_lea.vmem %s4, %s413
      // Predicated region
      $region37: #{local_fno_block_forward.3} parent=35 // pred_check
        %p415 = pneg %p127
      $region38: #{local_fno_block_forward.3} parent=35 // pred_check_branch
        %417 = sbr.rel (%p415) target = $region40
      $region39: #{local_fno_block_forward.3} parent=35 // pred_region
        _
      $region40: #{local_fno_block_forward.3} parent=35 // pred_fallthru
        _
    $region36: #{local_fno_block_forward.3} parent=5 // pred_fallthru
      _
    %p418 = scmp.le.s32.totalorder 2, %s10
    // Predicated region
    $region41: #{local_fno_block_forward.3} parent=5 // pred_check
      %p419 = pneg %p418
    $region42: #{local_fno_block_forward.3} parent=5 // pred_check_branch
      %421 = sbr.rel (%p419) target = $region44
    $region43: #{local_fno_block_forward.3} parent=5 // pred_region
      %s422 = ssub.s32 %s10, 2
      // Predicated region
      $region45: #{local_fno_block_forward.3} parent=43 // pred_check
        %p423 = pneg %p133
      $region46: #{local_fno_block_forward.3} parent=43 // pred_check_branch
        %425 = sbr.rel (%p423) target = $region48
      $region47: #{local_fno_block_forward.3} parent=43 // pred_region
        %p426 = scmp.lt.s32.totalorder %s16, 1
        %s427 = scalar_select %p426, %s16, 1
        %s428 = smul.addr %s427, 2
        %s429 = smul.addr %s428, 4
        %s430 = scalar_lea.vmem %s4, %s429
      $region48: #{local_fno_block_forward.3} parent=43 // pred_fallthru
        _
    $region44: #{local_fno_block_forward.3} parent=5 // pred_fallthru
      _
  $region6: #{local_fno_block_forward.3} parent=0 // loop_footer
    %s14 = sadd.s32 1, %s10
  $region7: #{local_fno_block_forward.3} parent=0 // loop_footer_branch
    %9 = sbr.rel target = $region3
  $region8: #{local_fno_block_forward.3} parent=0 // loop_exit
    _

</llo_original>
